<compile_context>
chip_gen: v7x
topology: tpu7x:2x2x1
jax: 0.10.0
libtpu: 0.0.40
codegen_flags: <defaults>
</compile_context>

<pallas_src>
import functools
import math

import jax
import jax.numpy as jnp
import numpy as np
from jax.experimental import pallas as pl
from jax.experimental.pallas import tpu as pltpu


# ----------------------------------------------------------------------------
# Kernel 1: per-batch attention + trans_conv + per-channel partial BN stats
# ----------------------------------------------------------------------------
def _attn_kernel(q_ref, kvt_ref, wq_ref, wkv_ref, wt_ref, y_ref, stats_ref,
                 *, q_out, scale):
    f32, bf16 = jnp.float32, jnp.bfloat16

    q = q_ref[0]            # (q_in, Nq)  f32
    kvt = kvt_ref[0]        # (k_in, Nk)  bf16  (kv already channels-major)
    wq = wq_ref[...]        # (q_out, q_in)        bf16
    wkv = wkv_ref[...]      # (q_out + q_in, k_in) bf16  (wk stacked over wv)
    wt = wt_ref[...]        # (q_in, q_in)         bf16

    q_in, nq = q.shape
    nk = kvt.shape[1]

    # Fused K/V projection: one MXU matmul, lane-dense on Nk.
    xkv = jnp.dot(wkv, kvt, preferred_element_type=f32)          # (q_out+q_in, Nk)
    xk = xkv[:q_out, :].astype(bf16)                             # (q_out, Nk)
    xv = xkv[q_out:, :].astype(bf16)                             # (q_in,  Nk)

    # Q projection, output already transposed to (Nq, q_out); softmax scale
    # applied here (Nk/q_out times smaller tensor than the energy).
    xq_t = jax.lax.dot_general(q.astype(bf16), wq, (((0,), (1,)), ((), ())),
                               preferred_element_type=f32) * scale   # (Nq, q_out)

    # Attention scores and softmax numerator (f32 for stability).
    energy = jnp.dot(xq_t.astype(bf16), xk, preferred_element_type=f32)  # (Nq, Nk)
    m = jnp.max(energy, axis=-1, keepdims=True)                          # (Nq, 1)
    p = jnp.exp(energy - m).astype(bf16)                                 # (Nq, Nk)

    # P @ V, produced directly as (q_in, Nq) -> no transpose of x_r.
    # The appended ones-row yields the softmax row-sums lane-major for free.
    xv_aug = jnp.concatenate([xv, jnp.ones((1, nk), bf16)], axis=0)      # (q_in+1, Nk)
    acc = jax.lax.dot_general(xv_aug, p, (((1,), (1,)), ((), ())),
                              preferred_element_type=f32)                # (q_in+1, Nq)
    inv_l = pl.reciprocal(acc[q_in:, :], approx=True)                    # (1, Nq), EUP
    x_rT = acc[:q_in, :] * inv_l                                         # (q_in, Nq)

    # Residual + trans_conv. The conv bias is omitted: it is exactly canceled
    # by the training-mode BatchNorm mean subtraction downstream.
    res = q - x_rT                                                       # (q_in, Nq) f32
    z = jnp.dot(wt, res.astype(bf16), preferred_element_type=f32)        # (q_in, Nq) f32

    y_ref[0] = z.astype(bf16)

    # Partial BN statistics (sum, sum-of-squares over Nq), channels on lanes.
    # Row-sums computed on the (otherwise idle) MXU in f32.
    ones_row = jnp.ones((1, nq), f32)
    s1 = jax.lax.dot_general(ones_row, z, (((1,), (1,)), ((), ())),
                             preferred_element_type=f32)                 # (1, q_in)
    s2 = jax.lax.dot_general(ones_row, z * z, (((1,), (1,)), ((), ())),
                             preferred_element_type=f32)                 # (1, q_in)
    stats_ref[0] = jnp.concatenate([s1, s2], axis=0)                     # (2, q_in)


# ----------------------------------------------------------------------------
# Kernel 2: per-batch BN-affine + ReLU + residual add
# ----------------------------------------------------------------------------
def _bn_relu_kernel(y_ref, q_ref, scale_ref, shift_ref, o_ref):
    z = y_ref[0].astype(jnp.float32)       # (q_in, Nq)  (stored as bf16)
    q = q_ref[0]                           # (q_in, Nq)  f32
    o_ref[0] = jnp.maximum(z * scale_ref[...] + shift_ref[...], 0.0) + q


# ----------------------------------------------------------------------------
# Wrapper
# ----------------------------------------------------------------------------
def seg_xattn_forward(q_tensor, kv_tensor, params, eps=1e-5):
    wq, wk, wv = params["wq"], params["wk"], params["wv"]
    wt = params["wt"]
    gamma, beta = params["gamma"], params["beta"]
    # params["bt"] (trans_conv bias) is mathematically canceled by the
    # training-mode BatchNorm mean subtraction, so it never enters the output
    # (the f32 reference below includes it and matches bit-for-logic).

    B, q_in, Nq = q_tensor.shape
    _, Nk, k_in = kv_tensor.shape
    q_out = wq.shape[0]
    bf16 = jnp.bfloat16

    q_f32 = q_tensor.astype(jnp.float32)
    # kv is consumed channels-major by the 1x1 convs (PyTorch permutes too);
    # transpose once in XLA and ship in bf16 (halves its HBM traffic, gives the
    # MXU-native layout for the fused projection).
    kv_t = jnp.swapaxes(kv_tensor, 1, 2).astype(bf16)            # (B, k_in, Nk)
    wq_b = wq.astype(bf16)
    wkv_b = jnp.concatenate([wk, wv], axis=0).astype(bf16)       # (q_out+q_in, k_in)
    wt_b = wt.astype(bf16)

    kernel1 = functools.partial(_attn_kernel, q_out=q_out,
                                scale=1.0 / math.sqrt(q_out))

    y, stats = pl.pallas_call(
        kernel1,
        grid=(B,),
        in_specs=[
            pl.BlockSpec((1, q_in, Nq), lambda b: (b, 0, 0)),
            pl.BlockSpec((1, k_in, Nk), lambda b: (b, 0, 0)),
            pl.BlockSpec((q_out, q_in), lambda b: (0, 0)),
            pl.BlockSpec((q_out + q_in, k_in), lambda b: (0, 0)),
            pl.BlockSpec((q_in, q_in), lambda b: (0, 0)),
        ],
        out_specs=[
            pl.BlockSpec((1, q_in, Nq), lambda b: (b, 0, 0)),
            pl.BlockSpec((1, 2, q_in), lambda b: (b, 0, 0)),
        ],
        out_shape=[
            jax.ShapeDtypeStruct((B, q_in, Nq), bf16),
            jax.ShapeDtypeStruct((B, 2, q_in), jnp.float32),
        ],
        compiler_params=pltpu.CompilerParams(
            dimension_semantics=("parallel",)),
    )(q_f32, kv_t, wq_b, wkv_b, wt_b)

    # BatchNorm1d finalization (training mode: batch statistics, biased var).
    n = float(B * Nq)
    total = jnp.sum(stats, axis=0)                       # (2, q_in)
    mean = total[0] / n
    var = jnp.maximum(total[1] / n - mean * mean, 0.0)   # guard cancellation
    inv_std = jax.lax.rsqrt(var + eps)
    scale = (gamma * inv_std).astype(jnp.float32).reshape(q_in, 1)
    shift = (beta - gamma * mean * inv_std).astype(jnp.float32).reshape(q_in, 1)

    out = pl.pallas_call(
        _bn_relu_kernel,
        grid=(B,),
        in_specs=[
            pl.BlockSpec((1, q_in, Nq), lambda b: (b, 0, 0)),
            pl.BlockSpec((1, q_in, Nq), lambda b: (b, 0, 0)),
            pl.BlockSpec((q_in, 1), lambda b: (0, 0)),
            pl.BlockSpec((q_in, 1), lambda b: (0, 0)),
        ],
        out_specs=pl.BlockSpec((1, q_in, Nq), lambda b: (b, 0, 0)),
        out_shape=jax.ShapeDtypeStruct((B, q_in, Nq), jnp.float32),
        compiler_params=pltpu.CompilerParams(
            dimension_semantics=("parallel",)),
    )(y, q_f32, scale, shift)
    return out


# ----------------------------------------------------------------------------
# Pure-JAX f32 reference (mirrors the PyTorch forward exactly, including bt)
# ----------------------------------------------------------------------------
def seg_xattn_reference(q, kv, params, eps=1e-5):
    wq, wk, wv = params["wq"], params["wk"], params["wv"]
    wt, bt = params["wt"], params["bt"]
    gamma, beta = params["gamma"], params["beta"]
    q_out = wq.shape[0]

    x_q = jnp.einsum("oi,bil->bol", wq, q)                       # (B, q_out, Nq)
    kvT = jnp.swapaxes(kv, 1, 2)                                 # (B, k_in, Nk)
    x_k = jnp.einsum("oi,bil->bol", wk, kvT)                     # (B, q_out, Nk)
    x_v = jnp.einsum("oi,bil->bol", wv, kvT)                     # (B, q_in, Nk)
    energy = jnp.einsum("bcq,bck->bqk", x_q, x_k)                # (B, Nq, Nk)
    attn = jax.nn.softmax(energy / math.sqrt(q_out), axis=-1)
    x_r = jnp.einsum("bqk,bck->bqc", attn, x_v)                  # (B, Nq, q_in)
    res = q - jnp.swapaxes(x_r, 1, 2)                            # (B, q_in, Nq)
    y = jnp.einsum("oi,bil->bol", wt, res) + bt[None, :, None]
    mean = jnp.mean(y, axis=(0, 2))
    var = jnp.var(y, axis=(0, 2))                                # biased, like BN
    yn = (y - mean[None, :, None]) / jnp.sqrt(var[None, :, None] + eps)
    act = jnp.maximum(gamma[None, :, None] * yn + beta[None, :, None], 0.0)
    return act + q


# ----------------------------------------------------------------------------
if __name__ == "__main__":
    # Small, TPU-friendly shapes consistent with the module's forward
    B, q_in, q_out, k_in = 2, 32, 32, 64
    Nq, Nk = 128, 128

    key = jax.random.PRNGKey(0)
    ks = jax.random.split(key, 8)
    params = {
        "wq": 0.1 * jax.random.normal(ks[0], (q_out, q_in), jnp.float32),
        "wk": 0.1 * jax.random.normal(ks[1], (q_out, k_in), jnp.float32),
        "wv": 0.1 * jax.random.normal(ks[2], (q_in, k_in), jnp.float32),
        "wt": 0.1 * jax.random.normal(ks[3], (q_in, q_in), jnp.float32),
        "bt": 0.1 * jax.random.normal(ks[4], (q_in,), jnp.float32),
        "gamma": jnp.ones((q_in,), jnp.float32),   # BatchNorm default init
        "beta": jnp.zeros((q_in,), jnp.float32),
    }

    q_tensor = jax.random.normal(ks[5], (B, q_in, Nq), jnp.float32)
    kv_tensor = jax.random.normal(ks[6], (B, Nk, k_in), jnp.float32)

    out = seg_xattn_forward(q_tensor, kv_tensor, params)
    out = jax.block_until_ready(out)

    ref = jax.block_until_ready(seg_xattn_reference(q_tensor, kv_tensor, params))
    # bf16 MXU operands + approx reciprocal => looser tolerance than pure f32.
    if not np.allclose(np.asarray(out), np.asarray(ref), rtol=3e-2, atol=3e-2):
        raise AssertionError("Pallas kernel output does not match reference")

    print("KERNEL_OK")
</pallas_src>

<mosaic_0001>
module attributes {stable_mosaic.version = 11 : i64} {
  func.func @_attn_kernel(%arg0: i32, %arg1: memref<1x32x128xf32, #tpu.memory_space<vmem>>, %arg2: memref<1x64x128xbf16, #tpu.memory_space<vmem>>, %arg3: memref<32x32xbf16, #tpu.memory_space<vmem>>, %arg4: memref<64x64xbf16, #tpu.memory_space<vmem>>, %arg5: memref<32x32xbf16, #tpu.memory_space<vmem>>, %arg6: memref<1x32x128xbf16, #tpu.memory_space<vmem>>, %arg7: memref<1x2x32xf32, #tpu.memory_space<vmem>>) attributes {dimension_semantics = [#tpu.dimension_semantics<parallel>], iteration_bounds = array<i64: 2>, scalar_prefetch = 0 : i64, scratch_operands = 0 : i64, tpu.core_type = #tpu.core_type<tc>, window_params = [{transform_indices = @transform_0, window_bounds = array<i64: 1, 32, 128>}, {transform_indices = @transform_1, window_bounds = array<i64: 1, 64, 128>}, {pipeline_mode = #tpu.pipeline_mode<synchronous>, transform_indices = @transform_2, window_bounds = array<i64: 32, 32>}, {pipeline_mode = #tpu.pipeline_mode<synchronous>, transform_indices = @transform_3, window_bounds = array<i64: 64, 64>}, {pipeline_mode = #tpu.pipeline_mode<synchronous>, transform_indices = @transform_4, window_bounds = array<i64: 32, 32>}, {transform_indices = @transform_5, window_bounds = array<i64: 1, 32, 128>}, {transform_indices = @transform_6, window_bounds = array<i64: 1, 2, 32>}]} {
    %c0 = arith.constant 0 : index
    %c0_0 = arith.constant 0 : index
    %c0_1 = arith.constant 0 : index
    %0 = vector.load %arg1[%c0, %c0_0, %c0_1] : memref<1x32x128xf32, #tpu.memory_space<vmem>>, vector<1x32x128xf32>
    %1 = vector.shape_cast %0 : vector<1x32x128xf32> to vector<32x128xf32>
    %c0_2 = arith.constant 0 : index
    %c0_3 = arith.constant 0 : index
    %c0_4 = arith.constant 0 : index
    %2 = vector.load %arg2[%c0_2, %c0_3, %c0_4] : memref<1x64x128xbf16, #tpu.memory_space<vmem>>, vector<1x64x128xbf16>
    %3 = vector.shape_cast %2 : vector<1x64x128xbf16> to vector<64x128xbf16>
    %c0_5 = arith.constant 0 : index
    %c0_6 = arith.constant 0 : index
    %4 = vector.load %arg3[%c0_5, %c0_6] : memref<32x32xbf16, #tpu.memory_space<vmem>>, vector<32x32xbf16>
    %c0_7 = arith.constant 0 : index
    %c0_8 = arith.constant 0 : index
    %5 = vector.load %arg4[%c0_7, %c0_8] : memref<64x64xbf16, #tpu.memory_space<vmem>>, vector<64x64xbf16>
    %c0_9 = arith.constant 0 : index
    %c0_10 = arith.constant 0 : index
    %6 = vector.load %arg5[%c0_9, %c0_10] : memref<32x32xbf16, #tpu.memory_space<vmem>>, vector<32x32xbf16>
    %cst = arith.constant dense<0.000000e+00> : vector<64x128xf32>
    %7 = tpu.matmul %5, %3, %cst {dimension_numbers = #tpu.dot_dimension_numbers<[1], [0], [0], [1], [0, 0, 1, 1], [], []>} : vector<64x64xbf16>, vector<64x128xbf16>, vector<64x128xf32> -> vector<64x128xf32>
    %8 = vector.extract_strided_slice %7 {offsets = [0, 0], sizes = [32, 128], strides = [1, 1]} : vector<64x128xf32> to vector<32x128xf32>
    %9 = arith.truncf %8 : vector<32x128xf32> to vector<32x128xbf16>
    %10 = vector.extract_strided_slice %7 {offsets = [32, 0], sizes = [32, 128], strides = [1, 1]} : vector<64x128xf32> to vector<32x128xf32>
    %11 = arith.truncf %10 : vector<32x128xf32> to vector<32x128xbf16>
    %12 = arith.truncf %1 : vector<32x128xf32> to vector<32x128xbf16>
    %cst_11 = arith.constant dense<0.000000e+00> : vector<128x32xf32>
    %13 = tpu.matmul %12, %4, %cst_11 {dimension_numbers = #tpu.dot_dimension_numbers<[0], [1], [1], [0], [0, 1, 1, 0], [], []>} : vector<32x128xbf16>, vector<32x32xbf16>, vector<128x32xf32> -> vector<128x32xf32>
    %cst_12 = arith.constant 0.176776692 : f32
    %14 = vector.broadcast %cst_12 : f32 to vector<128x32xf32>
    %15 = arith.mulf %13, %14 : vector<128x32xf32>
    %16 = arith.truncf %15 : vector<128x32xf32> to vector<128x32xbf16>
    %cst_13 = arith.constant dense<0.000000e+00> : vector<128x128xf32>
    %17 = tpu.matmul %16, %9, %cst_13 {dimension_numbers = #tpu.dot_dimension_numbers<[1], [0], [0], [1], [0, 0, 1, 1], [], []>} : vector<128x32xbf16>, vector<32x128xbf16>, vector<128x128xf32> -> vector<128x128xf32>
    %cst_14 = arith.constant dense<0xFF800000> : vector<128xf32>
    %18 = vector.multi_reduction <maximumf>, %17, %cst_14 [1] : vector<128x128xf32> to vector<128xf32>
    %19 = vector.shape_cast %18 : vector<128xf32> to vector<128x1xf32>
    %20 = vector.broadcast %19 : vector<128x1xf32> to vector<128x128xf32>
    %21 = arith.subf %17, %20 : vector<128x128xf32>
    %22 = math.exp %21 : vector<128x128xf32>
    %23 = arith.truncf %22 : vector<128x128xf32> to vector<128x128xbf16>
    %cst_15 = arith.constant 1.000000e+00 : bf16
    %24 = vector.broadcast %cst_15 : bf16 to vector<1x128xbf16>
    %25 = tpu.concatenate %11, %24 in 0 : vector<32x128xbf16>, vector<1x128xbf16> -> vector<33x128xbf16>
    %cst_16 = arith.constant dense<0.000000e+00> : vector<33x128xf32>
    %26 = tpu.matmul %25, %23, %cst_16 {dimension_numbers = #tpu.dot_dimension_numbers<[1], [1], [0], [0], [0, 0, 1, 0], [], []>} : vector<33x128xbf16>, vector<128x128xbf16>, vector<33x128xf32> -> vector<33x128xf32>
    %27 = vector.extract_strided_slice %26 {offsets = [32, 0], sizes = [1, 128], strides = [1, 1]} : vector<33x128xf32> to vector<1x128xf32>
    %28 = tpu.reciprocal %27 {approx = true} : vector<1x128xf32> -> vector<1x128xf32>
    %29 = vector.extract_strided_slice %26 {offsets = [0, 0], sizes = [32, 128], strides = [1, 1]} : vector<33x128xf32> to vector<32x128xf32>
    %30 = vector.broadcast %28 : vector<1x128xf32> to vector<32x128xf32>
    %31 = arith.mulf %29, %30 : vector<32x128xf32>
    %32 = arith.subf %1, %31 : vector<32x128xf32>
    %33 = arith.truncf %32 : vector<32x128xf32> to vector<32x128xbf16>
    %cst_17 = arith.constant dense<0.000000e+00> : vector<32x128xf32>
    %34 = tpu.matmul %6, %33, %cst_17 {dimension_numbers = #tpu.dot_dimension_numbers<[1], [0], [0], [1], [0, 0, 1, 1], [], []>} : vector<32x32xbf16>, vector<32x128xbf16>, vector<32x128xf32> -> vector<32x128xf32>
    %35 = arith.truncf %34 : vector<32x128xf32> to vector<32x128xbf16>
    %c0_18 = arith.constant 0 : index
    %c0_19 = arith.constant 0 : index
    %c0_20 = arith.constant 0 : index
    %36 = vector.load %arg6[%c0_18, %c0_19, %c0_20] : memref<1x32x128xbf16, #tpu.memory_space<vmem>>, vector<1x32x128xbf16>
    %37 = vector.shape_cast %36 : vector<1x32x128xbf16> to vector<32x128xbf16>
    %38 = vector.shape_cast %35 : vector<32x128xbf16> to vector<1x32x128xbf16>
    tpu.vector_store %arg6[%c0_18, %c0_19, %c0_20], %38 {strides = array<i32>} : memref<1x32x128xbf16, #tpu.memory_space<vmem>>, vector<1x32x128xbf16>,
    %cst_21 = arith.constant 1.000000e+00 : f32
    %39 = vector.broadcast %cst_21 : f32 to vector<1x128xf32>
    %cst_22 = arith.constant dense<0.000000e+00> : vector<1x32xf32>
    %40 = tpu.matmul %39, %34, %cst_22 {dimension_numbers = #tpu.dot_dimension_numbers<[1], [1], [0], [0], [0, 0, 1, 0], [], []>} : vector<1x128xf32>, vector<32x128xf32>, vector<1x32xf32> -> vector<1x32xf32>
    %41 = arith.mulf %34, %34 : vector<32x128xf32>
    %cst_23 = arith.constant dense<0.000000e+00> : vector<1x32xf32>
    %42 = tpu.matmul %39, %41, %cst_23 {dimension_numbers = #tpu.dot_dimension_numbers<[1], [1], [0], [0], [0, 0, 1, 0], [], []>} : vector<1x128xf32>, vector<32x128xf32>, vector<1x32xf32> -> vector<1x32xf32>
    %43 = tpu.concatenate %40, %42 in 0 : vector<1x32xf32>, vector<1x32xf32> -> vector<2x32xf32>
    %c0_24 = arith.constant 0 : index
    %c0_25 = arith.constant 0 : index
    %c0_26 = arith.constant 0 : index
    %44 = vector.load %arg7[%c0_24, %c0_25, %c0_26] : memref<1x2x32xf32, #tpu.memory_space<vmem>>, vector<1x2x32xf32>
    %45 = vector.shape_cast %44 : vector<1x2x32xf32> to vector<2x32xf32>
    %46 = vector.shape_cast %43 : vector<2x32xf32> to vector<1x2x32xf32>
    tpu.vector_store %arg7[%c0_24, %c0_25, %c0_26], %46 {strides = array<i32>} : memref<1x2x32xf32, #tpu.memory_space<vmem>>, vector<1x2x32xf32>,
    return
  }
  func.func @transform_0(%arg0: i32) -> (i32, i32, i32) {
    %c0_i32 = arith.constant 0 : i32
    %c0_i32_0 = arith.constant 0 : i32
    %c0_i32_1 = arith.constant 0 : i32
    return %arg0, %c0_i32, %c0_i32_0 : i32, i32, i32
  }
  func.func @transform_1(%arg0: i32) -> (i32, i32, i32) {
    %c0_i32 = arith.constant 0 : i32
    %c0_i32_0 = arith.constant 0 : i32
    %c0_i32_1 = arith.constant 0 : i32
    return %arg0, %c0_i32, %c0_i32_0 : i32, i32, i32
  }
  func.func @transform_2(%arg0: i32) -> (i32, i32) {
    %c0_i32 = arith.constant 0 : i32
    %c0_i32_0 = arith.constant 0 : i32
    %c0_i32_1 = arith.constant 0 : i32
    return %c0_i32, %c0_i32_0 : i32, i32
  }
  func.func @transform_3(%arg0: i32) -> (i32, i32) {
    %c0_i32 = arith.constant 0 : i32
    %c0_i32_0 = arith.constant 0 : i32
    %c0_i32_1 = arith.constant 0 : i32
    return %c0_i32, %c0_i32_0 : i32, i32
  }
  func.func @transform_4(%arg0: i32) -> (i32, i32) {
    %c0_i32 = arith.constant 0 : i32
    %c0_i32_0 = arith.constant 0 : i32
    %c0_i32_1 = arith.constant 0 : i32
    return %c0_i32, %c0_i32_0 : i32, i32
  }
  func.func @transform_5(%arg0: i32) -> (i32, i32, i32) {
    %c0_i32 = arith.constant 0 : i32
    %c0_i32_0 = arith.constant 0 : i32
    %c0_i32_1 = arith.constant 0 : i32
    return %arg0, %c0_i32, %c0_i32_0 : i32, i32, i32
  }
  func.func @transform_6(%arg0: i32) -> (i32, i32, i32) {
    %c0_i32 = arith.constant 0 : i32
    %c0_i32_0 = arith.constant 0 : i32
    %c0_i32_1 = arith.constant 0 : i32
    return %arg0, %c0_i32, %c0_i32_0 : i32, i32, i32
  }
}

</mosaic_0001>

<llo_original>
// kernel: tpu_custom_call.1
$region0: #{tpu_custom_call.1}
  #allocation0 [shape = 'u32[]', space=smem, size = 0x4, offset = 0x4, fixed_abs, tag = 'smem constant byte address 0x4 - core index']
  #allocation1 [shape = 'u32[144,128]{1,0:T(1,128)}', space=vmem, size = 0x12000, scoped, tag = 'internal scratch']
  %s0 = inlined_call_operand.hbm [shape: f32[2,32,128], index: 0, kind: input, shape index: {}]
  %s1 = inlined_call_operand.hbm [shape: bf16[2,64,128], index: 1, kind: input, shape index: {}]
  %s2 = inlined_call_operand.hbm [shape: bf16[32,32], index: 2, kind: input, shape index: {}]
  %s3 = inlined_call_operand.hbm [shape: bf16[64,64], index: 3, kind: input, shape index: {}]
  %s4 = inlined_call_operand.hbm [shape: bf16[32,32], index: 4, kind: input, shape index: {}]
  %s5 = inlined_call_operand.hbm [shape: bf16[2,32,128], index: 5, kind: output, shape index: {0}]
  %s6 = inlined_call_operand.hbm [shape: f32[2,2,32], index: 6, kind: output, shape index: {1}]
  %7 = xla_tuple %s5, %s6
  %s8 = sld [smem:[#allocation0]]
  $region81: #{tpu_custom_call.1} parent=0
    _
  %s10 = ssub.s32 1, %s8
  %s11 = scalar_select 0, %s10, %s8
  $region1: #{tpu_custom_call.1} parent=0
    #allocation2 [shape = 'u8[32768]{0}', space=vmem, size = 0x8000, scoped, tag = 'input window, operand 0']
    #allocation3 [shape = 's32[2]{0}', space=sflag, size = 0x8, scoped, tag = 'scoped memory for tpu_custom_call.1']
    #allocation4 [shape = 's32[2]{0}', space=sflag, size = 0x8, scoped, tag = 'scoped memory for tpu_custom_call.1']
    #allocation5 [shape = 'u8[32768]{0}', space=vmem, size = 0x8000, scoped, tag = 'input window, operand 1']
    #allocation6 [shape = 's32[2]{0}', space=sflag, size = 0x8, scoped, tag = 'scoped memory for tpu_custom_call.1']
    #allocation7 [shape = 'u8[8192]{0}', space=vmem, size = 0x2000, scoped, tag = 'input window, operand 2, single buffered']
    #allocation8 [shape = 'u8[16384]{0}', space=vmem, size = 0x4000, scoped, tag = 'input window, operand 3, single buffered']
    #allocation9 [shape = 's32[1]{0}', space=sflag, size = 0x4, scoped, tag = 'scoped memory for tpu_custom_call.1']
    #allocation10 [shape = 'u8[8192]{0}', space=vmem, size = 0x2000, scoped, tag = 'input window, operand 4, single buffered']
    #allocation11 [shape = 'u8[16384]{0}', space=vmem, size = 0x4000, scoped, tag = 'output window, operand 0']
    #allocation12 [shape = 'u8[2048]{0}', space=vmem, size = 0x800, scoped, tag = 'output window, operand 1']
    #allocation13 [shape = 's32[2]{0}', space=sflag, size = 0x8, scoped, tag = 'scoped memory for tpu_custom_call.1']
    %12 = vsyncpa [#allocation3], 0
    %s13 = scalar_lea.sflag [#allocation3], 1
    %14 = vsyncpa %s13, 0
    %15 = vsyncpa [#allocation6], 0
    %s16 = scalar_lea.sflag [#allocation6], 1
    %17 = vsyncpa %s16, 0
    %18 = vsyncpa [#allocation9], 0
    %19 = vsyncpa [#allocation4], 0
    %s20 = scalar_lea.sflag [#allocation4], 1
    %21 = vsyncpa %s20, 0
    %22 = vsyncpa [#allocation13], 0
    %s23 = scalar_lea.sflag [#allocation13], 1
    %24 = vsyncpa %s23, 0
    loop: start=0, step=1, limit=4
    $region2: #{tpu_custom_call.1} parent=1 // loop_pre_header
      _
    $region3: #{tpu_custom_call.1} parent=1 // loop_header
      %s26 = sphi 0, %s30
      %p27 = scmp.ge.s32.totalorder %s26, 4
      %s36 = sphi 0, %s38
      %s39 = sphi 0, %s36
      %s40 = sphi 0, %s39
      %s56 = sphi 0, %s40
      %s62 = sphi 0, %s64
      %s65 = sphi 0, %s62
      %s66 = sphi 0, %s65
      %s82 = sphi 0, %s66
      %s86 = sphi 0, %s86
      %s88 = sphi 0, %s86
      %s89 = sphi 0, %s88
      %s103 = sphi 0, %s89
      %s107 = sphi 0, %s107
      %s109 = sphi 0, %s107
      %s110 = sphi 0, %s109
      %s124 = sphi 0, %s110
      %s128 = sphi 0, %s128
      %s130 = sphi 0, %s128
      %s131 = sphi 0, %s130
      %s145 = sphi 0, %s131
      %s151 = sphi 0, %s153
      %s154 = sphi 0, %s151
      %s155 = sphi 0, %s154
      %s171 = sphi 0, %s155
      %s177 = sphi 0, %s179
      %s180 = sphi 0, %s177
      %s181 = sphi 0, %s180
      %s197 = sphi 0, %s181
    $region4: #{tpu_custom_call.1} parent=1 // loop_header_branch
      %29 = sbr.rel (%p27) target = $region8
    $region5: #{tpu_custom_call.1} parent=1 // loop_body
      %s31 = ssub.s32 %s26, 1
      %s32 = ssub.s32 %s26, 2
      %s33 = sadd.s32 %s26, 1
      %s34 = ssub.s32 %s26, %s33
      %p35 = scmp.eq.s32.totalorder %s34, 0
      %s37 = sadd.s32 %s36, 1
      %s38 = scalar_select %p35, %s36, %s37
      %p41 = pneg %p35
      %p42 = scmp.eq.s32.totalorder %s26, 1
      %p43 = por %p41, %p42
      %p44 = scmp.ne.s32.totalorder %s36, %s39
      %p45 = scmp.eq.s32.totalorder %s26, 0
      %p46 = por %p44, %p45
      %p47 = scmp.ne.s32.totalorder %s36, %s39
      %p48 = scmp.eq.s32.totalorder %s31, 1
      %p49 = por %p47, %p48
      %p50 = scmp.ne.s32.totalorder %s39, %s40
      %p51 = scmp.eq.s32.totalorder %s31, 0
      %p52 = por %p50, %p51
      %p53 = scmp.ne.s32.totalorder %s39, %s40
      %p54 = scmp.eq.s32.totalorder %s32, 1
      %p55 = por %p53, %p54
      %p57 = scmp.ne.s32.totalorder %s40, %s56
      %p58 = scmp.eq.s32.totalorder %s32, 0
      %p59 = por %p57, %p58
      %s60 = ssub.s32 %s26, %s33
      %p61 = scmp.eq.s32.totalorder %s60, 0
      %s63 = sadd.s32 %s62, 1
      %s64 = scalar_select %p61, %s62, %s63
      %p67 = pneg %p61
      %p68 = scmp.eq.s32.totalorder %s26, 1
      %p69 = por %p67, %p68
      %p70 = scmp.ne.s32.totalorder %s62, %s65
      %p71 = scmp.eq.s32.totalorder %s26, 0
      %p72 = por %p70, %p71
      %p73 = scmp.ne.s32.totalorder %s62, %s65
      %p74 = scmp.eq.s32.totalorder %s31, 1
      %p75 = por %p73, %p74
      %p76 = scmp.ne.s32.totalorder %s65, %s66
      %p77 = scmp.eq.s32.totalorder %s31, 0
      %p78 = por %p76, %p77
      %p79 = scmp.ne.s32.totalorder %s65, %s66
      %p80 = scmp.eq.s32.totalorder %s32, 1
      %p81 = por %p79, %p80
      %p83 = scmp.ne.s32.totalorder %s66, %s82
      %p84 = scmp.eq.s32.totalorder %s32, 0
      %p85 = por %p83, %p84
      %s87 = sadd.s32 %s86, 1
      %p90 = scmp.eq.s32.totalorder %s26, 1
      %p91 = scmp.ne.s32.totalorder %s86, %s88
      %p92 = scmp.eq.s32.totalorder %s26, 0
      %p93 = por %p91, %p92
      %p94 = scmp.ne.s32.totalorder %s86, %s88
      %p95 = scmp.eq.s32.totalorder %s31, 1
      %p96 = por %p94, %p95
      %p97 = scmp.ne.s32.totalorder %s88, %s89
      %p98 = scmp.eq.s32.totalorder %s31, 0
      %p99 = por %p97, %p98
      %p100 = scmp.ne.s32.totalorder %s88, %s89
      %p101 = scmp.eq.s32.totalorder %s32, 1
      %p102 = por %p100, %p101
      %p104 = scmp.ne.s32.totalorder %s89, %s103
      %p105 = scmp.eq.s32.totalorder %s32, 0
      %p106 = por %p104, %p105
      %s108 = sadd.s32 %s107, 1
      %p111 = scmp.eq.s32.totalorder %s26, 1
      %p112 = scmp.ne.s32.totalorder %s107, %s109
      %p113 = scmp.eq.s32.totalorder %s26, 0
      %p114 = por %p112, %p113
      %p115 = scmp.ne.s32.totalorder %s107, %s109
      %p116 = scmp.eq.s32.totalorder %s31, 1
      %p117 = por %p115, %p116
      %p118 = scmp.ne.s32.totalorder %s109, %s110
      %p119 = scmp.eq.s32.totalorder %s31, 0
      %p120 = por %p118, %p119
      %p121 = scmp.ne.s32.totalorder %s109, %s110
      %p122 = scmp.eq.s32.totalorder %s32, 1
      %p123 = por %p121, %p122
      %p125 = scmp.ne.s32.totalorder %s110, %s124
      %p126 = scmp.eq.s32.totalorder %s32, 0
      %p127 = por %p125, %p126
      %s129 = sadd.s32 %s128, 1
      %p132 = scmp.eq.s32.totalorder %s26, 1
      %p133 = scmp.ne.s32.totalorder %s128, %s130
      %p134 = scmp.eq.s32.totalorder %s26, 0
      %p135 = por %p133, %p134
      %p136 = scmp.ne.s32.totalorder %s128, %s130
      %p137 = scmp.eq.s32.totalorder %s31, 1
      %p138 = por %p136, %p137
      %p139 = scmp.ne.s32.totalorder %s130, %s131
      %p140 = scmp.eq.s32.totalorder %s31, 0
      %p141 = por %p139, %p140
      %p142 = scmp.ne.s32.totalorder %s130, %s131
      %p143 = scmp.eq.s32.totalorder %s32, 1
      %p144 = por %p142, %p143
      %p146 = scmp.ne.s32.totalorder %s131, %s145
      %p147 = scmp.eq.s32.totalorder %s32, 0
      %p148 = por %p146, %p147
      %s149 = ssub.s32 %s26, %s33
      %p150 = scmp.eq.s32.totalorder %s149, 0
      %s152 = sadd.s32 %s151, 1
      %s153 = scalar_select %p150, %s151, %s152
      %p156 = pneg %p150
      %p157 = scmp.eq.s32.totalorder %s26, 1
      %p158 = por %p156, %p157
      %p159 = scmp.ne.s32.totalorder %s151, %s154
      %p160 = scmp.eq.s32.totalorder %s26, 0
      %p161 = por %p159, %p160
      %p162 = scmp.ne.s32.totalorder %s151, %s154
      %p163 = scmp.eq.s32.totalorder %s31, 1
      %p164 = por %p162, %p163
      %p165 = scmp.ne.s32.totalorder %s154, %s155
      %p166 = scmp.eq.s32.totalorder %s31, 0
      %p167 = por %p165, %p166
      %p168 = scmp.ne.s32.totalorder %s154, %s155
      %p169 = scmp.eq.s32.totalorder %s32, 1
      %p170 = por %p168, %p169
      %p172 = scmp.ne.s32.totalorder %s155, %s171
      %p173 = scmp.eq.s32.totalorder %s32, 0
      %p174 = por %p172, %p173
      %s175 = ssub.s32 %s26, %s33
      %p176 = scmp.eq.s32.totalorder %s175, 0
      %s178 = sadd.s32 %s177, 1
      %s179 = scalar_select %p176, %s177, %s178
      %p182 = pneg %p176
      %p183 = scmp.eq.s32.totalorder %s26, 1
      %p184 = por %p182, %p183
      %p185 = scmp.ne.s32.totalorder %s177, %s180
      %p186 = scmp.eq.s32.totalorder %s26, 0
      %p187 = por %p185, %p186
      %p188 = scmp.ne.s32.totalorder %s177, %s180
      %p189 = scmp.eq.s32.totalorder %s31, 1
      %p190 = por %p188, %p189
      %p191 = scmp.ne.s32.totalorder %s180, %s181
      %p192 = scmp.eq.s32.totalorder %s31, 0
      %p193 = por %p191, %p192
      %p194 = scmp.ne.s32.totalorder %s180, %s181
      %p195 = scmp.eq.s32.totalorder %s32, 1
      %p196 = por %p194, %p195
      %p198 = scmp.ne.s32.totalorder %s181, %s197
      %p199 = scmp.eq.s32.totalorder %s32, 0
      %p200 = por %p198, %p199
      %p201 = scmp.le.s32.totalorder 1, %s26
      %p202 = scmp.lt.s32.totalorder %s26, 3
      %p203 = pnand %p201, %p202
      %p204 = pneg %p203
      // Predicated region
      $region9: #{tpu_custom_call.1} parent=5 // pred_check
        _
      $region10: #{tpu_custom_call.1} parent=5 // pred_check_branch
        %206 = sbr.rel (%p203) target = $region12
      $region11: #{tpu_custom_call.1} parent=5 // pred_region
        %s207 = ssub.s32 %s26, 1
        // Predicated region
        $region13: #{tpu_custom_call.1} parent=11 // pred_check
          %p208 = pneg %p99
        $region14: #{tpu_custom_call.1} parent=11 // pred_check_branch
          %210 = sbr.rel (%p208) target = $region16
        $region15: #{tpu_custom_call.1} parent=11 // pred_region
          %s212 = ssub.s32 256, 256
          %213 = vsyncadd [#allocation6], %s212
          %s214 = sshll.u32 [#allocation7], 4
          %s215 = int_to_ptr.vmem [resolvable:$true] %s214
          %220 = dma.hbm_to_vmem [thread:$0]  %s2, 256, %s215, [#allocation6], 64, 64, 4
        $region16: #{tpu_custom_call.1} parent=11 // pred_fallthru
          _
        // Predicated region
        $region17: #{tpu_custom_call.1} parent=11 // pred_check
          %p221 = pneg %p120
        $region18: #{tpu_custom_call.1} parent=11 // pred_check_branch
          %223 = sbr.rel (%p221) target = $region20
        $region19: #{tpu_custom_call.1} parent=11 // pred_region
          %s225 = ssub.s32 512, 512
          %226 = vsyncadd [#allocation9], %s225
          %s227 = sshll.u32 [#allocation8], 4
          %s228 = int_to_ptr.vmem [resolvable:$true] %s227
          %233 = dma.hbm_to_vmem [thread:$0]  %s3, 512, %s228, [#allocation9], 64, 64, 4
        $region20: #{tpu_custom_call.1} parent=11 // pred_fallthru
          _
        // Predicated region
        $region21: #{tpu_custom_call.1} parent=11 // pred_check
          %p234 = pneg %p141
        $region22: #{tpu_custom_call.1} parent=11 // pred_check_branch
          %236 = sbr.rel (%p234) target = $region24
        $region23: #{tpu_custom_call.1} parent=11 // pred_region
          %s238 = ssub.s32 256, 256
          %239 = vsyncadd [#allocation9], %s238
          %s240 = sshll.u32 [#allocation10], 4
          %s241 = int_to_ptr.vmem [resolvable:$true] %s240
          %246 = dma.hbm_to_vmem [thread:$0]  %s4, 256, %s241, [#allocation9], 64, 64, 4
        $region24: #{tpu_custom_call.1} parent=11 // pred_fallthru
          _
      $region12: #{tpu_custom_call.1} parent=5 // pred_fallthru
        _
      %p247 = scmp.lt.s32.totalorder %s26, 2
      // Predicated region
      $region25: #{tpu_custom_call.1} parent=5 // pred_check
        %p248 = pneg %p247
      $region26: #{tpu_custom_call.1} parent=5 // pred_check_branch
        %250 = sbr.rel (%p248) target = $region28
      $region27: #{tpu_custom_call.1} parent=5 // pred_region
        // Predicated region
        $region29: #{tpu_custom_call.1} parent=27 // pred_check
          %p251 = pneg %p46
        $region30: #{tpu_custom_call.1} parent=27 // pred_check_branch
          %253 = sbr.rel (%p251) target = $region32
        $region31: #{tpu_custom_call.1} parent=27 // pred_region
          %s254 = sand.u32 %s36, 1
          %s255 = scalar_lea.sflag [#allocation3], %s254
          %s256 = sand.u32 %s36, 1
          %s257 = smul.addr %s256, 32
          %s258 = scalar_lea.vmem [#allocation2], %s257
          %s260 = ssub.s32 512, 512
          %261 = vsyncadd %s255, %s260
          %s262 = smul.addr %s26, 4
          %s263 = smul.addr %s262, 128
          %s264 = scalar_lea.hbm %s0, %s263
          %s265 = sshll.u32 %s258, 4
          %s266 = int_to_ptr.vmem [resolvable:$true] %s265
          %271 = dma.hbm_to_vmem [thread:$0]  %s264, 512, %s266, %s255, 128, 128, 8
        $region32: #{tpu_custom_call.1} parent=27 // pred_fallthru
          _
        // Predicated region
        $region33: #{tpu_custom_call.1} parent=27 // pred_check
          %p272 = pneg %p72
        $region34: #{tpu_custom_call.1} parent=27 // pred_check_branch
          %274 = sbr.rel (%p272) target = $region36
        $region35: #{tpu_custom_call.1} parent=27 // pred_region
          %s275 = sand.u32 %s26, 1
          %s276 = scalar_lea.sflag [#allocation6], %s275
          %s277 = sand.u32 %s62, 1
          %s278 = smul.addr %s277, 32
          %s279 = scalar_lea.vmem [#allocation5], %s278
          %s281 = ssub.s32 512, 512
          %282 = vsyncadd %s276, %s281
          %s283 = smul.addr %s26, 8
          %s284 = smul.addr %s283, 64
          %s285 = scalar_lea.hbm %s1, %s284
          %s286 = sshll.u32 %s279, 4
          %s287 = int_to_ptr.vmem [resolvable:$true] %s286
          %292 = dma.hbm_to_vmem [thread:$0]  %s285, 512, %s287, %s276, 64, 64, 4
        $region36: #{tpu_custom_call.1} parent=27 // pred_fallthru
          _
      $region28: #{tpu_custom_call.1} parent=5 // pred_fallthru
        _
      %p293 = scmp.le.s32.totalorder 1, %s26
      %p294 = scmp.lt.s32.totalorder %s26, 3
      %p295 = pnand %p293, %p294
      %p296 = pneg %p295
      // Predicated region
      $region37: #{tpu_custom_call.1} parent=5 // pred_check
        _
      $region38: #{tpu_custom_call.1} parent=5 // pred_check_branch
        %298 = sbr.rel (%p295) target = $region40
      $region39: #{tpu_custom_call.1} parent=5 // pred_region
        %s299 = ssub.s32 %s26, 1
        %s300 = sand.u32 %s39, 1
        %s301 = scalar_lea.sflag [#allocation3], %s300
        %s302 = sand.u32 %s39, 1
        %s303 = smul.addr %s302, 32
        %s304 = scalar_lea.vmem [#allocation2], %s303
        // Predicated region
        $region41: #{tpu_custom_call.1} parent=39 // pred_check
          %p305 = pneg %p52
        $region42: #{tpu_custom_call.1} parent=39 // pred_check_branch
          %307 = sbr.rel (%p305) target = $region44
        $region43: #{tpu_custom_call.1} parent=39 // pred_region
          %308 = dma.done %s301, 512
        $region44: #{tpu_custom_call.1} parent=39 // pred_fallthru
          _
        %s309 = sand.u32 %s31, 1
        %s310 = scalar_lea.sflag [#allocation6], %s309
        %s311 = sand.u32 %s65, 1
        %s312 = smul.addr %s311, 32
        %s313 = scalar_lea.vmem [#allocation5], %s312
        // Predicated region
        $region45: #{tpu_custom_call.1} parent=39 // pred_check
          %p314 = pneg %p78
        $region46: #{tpu_custom_call.1} parent=39 // pred_check_branch
          %316 = sbr.rel (%p314) target = $region48
        $region47: #{tpu_custom_call.1} parent=39 // pred_region
          %317 = dma.done %s310, 512
        $region48: #{tpu_custom_call.1} parent=39 // pred_fallthru
          _
        // Predicated region
        $region49: #{tpu_custom_call.1} parent=39 // pred_check
          %p318 = pneg %p99
        $region50: #{tpu_custom_call.1} parent=39 // pred_check_branch
          %320 = sbr.rel (%p318) target = $region52
        $region51: #{tpu_custom_call.1} parent=39 // pred_region
          %321 = dma.done [#allocation6], 256
        $region52: #{tpu_custom_call.1} parent=39 // pred_fallthru
          _
        // Predicated region
        $region53: #{tpu_custom_call.1} parent=39 // pred_check
          %p322 = pneg %p120
        $region54: #{tpu_custom_call.1} parent=39 // pred_check_branch
          %324 = sbr.rel (%p322) target = $region56
        $region55: #{tpu_custom_call.1} parent=39 // pred_region
          %325 = dma.done [#allocation9], 512
        $region56: #{tpu_custom_call.1} parent=39 // pred_fallthru
          _
        // Predicated region
        $region57: #{tpu_custom_call.1} parent=39 // pred_check
          %p326 = pneg %p141
        $region58: #{tpu_custom_call.1} parent=39 // pred_check_branch
          %328 = sbr.rel (%p326) target = $region60
        $region59: #{tpu_custom_call.1} parent=39 // pred_region
          %329 = dma.done [#allocation9], 256
        $region60: #{tpu_custom_call.1} parent=39 // pred_fallthru
          _
        %s330 = sand.u32 %s39, 1
        %s331 = scalar_lea.sflag [#allocation3], %s330
        %s332 = sand.u32 %s39, 1
        %s333 = smul.addr %s332, 32
        %s334 = scalar_lea.vmem [#allocation2], %s333
        %p335 = pneg %p52
        %p336 = pneg %p49
        %s337 = sand.u32 %s31, 1
        %s338 = scalar_lea.sflag [#allocation6], %s337
        %s339 = sand.u32 %s65, 1
        %s340 = smul.addr %s339, 32
        %s341 = scalar_lea.vmem [#allocation5], %s340
        %p342 = pneg %p78
        %p343 = pneg %p75
        %p344 = pneg %p99
        %p345 = pneg %p96
        %p346 = pneg %p120
        %p347 = pneg %p117
        %p348 = pneg %p141
        %p349 = pneg %p138
        %p350 = pneg %p167
        %p351 = pneg %p164
        %s352 = sand.u32 %s154, 1
        %s353 = scalar_lea.sflag [#allocation4], %s352
        %s354 = sand.u32 %s154, 1
        %s355 = smul.addr %s354, 16
        %s356 = scalar_lea.vmem [#allocation11], %s355
        %p357 = pneg %p193
        %p358 = pneg %p190
        %s359 = sand.u32 %s180, 1
        %s360 = scalar_lea.sflag [#allocation13], %s359
        %s361 = sand.u32 %s180, 1
        %s362 = smul.addr %s361, 2
        %s363 = scalar_lea.vmem [#allocation12], %s362
        %v366 = vld [vmem:[%s304] sm:$0xff]
        %v367 = vld [vmem:[%s304 + $0x8] sm:$0xff]
        %v368 = vld [vmem:[%s304 + $0x10] sm:$0xff]
        %v369 = vld [vmem:[%s304 + $0x18] sm:$0xff]
        %v370 = vld [vmem:[%s313] sm:$0xf]
        %v371 = vld [vmem:[%s313 + $0x4] sm:$0xf]
        %v372 = vld [vmem:[%s313 + $0x8] sm:$0xf]
        %v373 = vld [vmem:[%s313 + $0xc] sm:$0xf]
        %v374 = vld [vmem:[%s313 + $0x10] sm:$0xf]
        %v375 = vld [vmem:[%s313 + $0x14] sm:$0xf]
        %v376 = vld [vmem:[%s313 + $0x18] sm:$0xf]
        %v377 = vld [vmem:[%s313 + $0x1c] sm:$0xf]
        %v378 = vld [vmem:[#allocation7] sm:$0xf]
        %v379 = vld [vmem:[#allocation7 + $0x4] sm:$0xf]
        %v380 = vld [vmem:[#allocation7 + $0x8] sm:$0xf]
        %v381 = vld [vmem:[#allocation7 + $0xc] sm:$0xf]
        %v382 = vld [vmem:[#allocation8] sm:$0xf]
        %v383 = vld [vmem:[#allocation8 + $0x4] sm:$0xf]
        %v384 = vld [vmem:[#allocation8 + $0x8] sm:$0xf]
        %v385 = vld [vmem:[#allocation8 + $0xc] sm:$0xf]
        %v386 = vld [vmem:[#allocation8 + $0x10] sm:$0xf]
        %v387 = vld [vmem:[#allocation8 + $0x14] sm:$0xf]
        %v388 = vld [vmem:[#allocation8 + $0x18] sm:$0xf]
        %v389 = vld [vmem:[#allocation8 + $0x1c] sm:$0xf]
        %v390 = vld [vmem:[#allocation10] sm:$0xf]
        %v391 = vld [vmem:[#allocation10 + $0x4] sm:$0xf]
        %v392 = vld [vmem:[#allocation10 + $0x8] sm:$0xf]
        %v393 = vld [vmem:[#allocation10 + $0xc] sm:$0xf]
        %v402 = vunpack.c.l.b16 %v382
        %v403 = vunpack.c.l.b16 %v383
        %v404 = vunpack.c.l.b16 %v384
        %v405 = vunpack.c.l.b16 %v385
        %v406 = vunpack.c.l.b16 %v386
        %v407 = vunpack.c.l.b16 %v387
        %v408 = vunpack.c.l.b16 %v388
        %v409 = vunpack.c.l.b16 %v389
        %v410 = vpack.c.b16 %v403, %v402
        %v411 = vpack.c.b16 %v405, %v404
        %v412 = vpack.c.b16 %v407, %v406
        %v413 = vpack.c.b16 %v409, %v408
        %v422 = vunpack.c.l.b16 %v370
        %v423 = vunpack.c.l.b16 %v371
        %v424 = vunpack.c.l.b16 %v372
        %v425 = vunpack.c.l.b16 %v373
        %v426 = vunpack.c.l.b16 %v374
        %v427 = vunpack.c.l.b16 %v375
        %v428 = vunpack.c.l.b16 %v376
        %v429 = vunpack.c.l.b16 %v377
        %v430 = vpack.c.b16 %v423, %v422
        %v431 = vpack.c.b16 %v425, %v424
        %v432 = vpack.c.b16 %v427, %v426
        %v433 = vpack.c.b16 %v429, %v428
        %vm438 = vcmask 523264
        %v440 = vsel %vm438, %v410, 0
        %v443 = vsel %vm438, %v411, 0
        %v446 = vsel %vm438, %v412, 0
        %v449 = vsel %vm438, %v413, 0
        %451 = vmatprep.subr.bf16.mxu0 0
        %452 = vmatpush1.bf16.msra.mxu0 %v430
        %453 = vmatprep.subr.bf16.mxu0 0
        %454 = vmatpush1.bf16.msra.mxu0 %v431
        %455 = vmatprep.subr.bf16.mxu0 0
        %456 = vmatpush1.bf16.msra.mxu0 %v432
        %457 = vmatprep.subr.bf16.mxu0 0
        %458 = vmatpush1.bf16.msra.mxu0 %v433
        %459 = vmatprep.subr.bf16.mxu0 0
        %460 = vmatpush1.bf16.msra.mxu0 0
        %461 = vmatprep.subr.bf16.mxu0 0
        %462 = vmatpush1.bf16.msra.mxu0 0
        %463 = vmatprep.subr.bf16.mxu0 0
        %464 = vmatpush1.bf16.msra.mxu0 0
        %465 = vmatprep.subr.bf16.mxu0 0
        %466 = vmatpush1.bf16.msra.mxu0 0
        %467 = vmatprep.subr.bf16.mxu0 0
        %468 = vmatpush1.bf16.msra.mxu0 0
        %469 = vmatprep.subr.bf16.mxu0 0
        %470 = vmatpush1.bf16.msra.mxu0 0
        %471 = vmatprep.subr.bf16.mxu0 0
        %472 = vmatpush1.bf16.msra.mxu0 0
        %473 = vmatprep.subr.bf16.mxu0 0
        %474 = vmatpush1.bf16.msra.mxu0 0
        %475 = vmatprep.subr.bf16.mxu0 0
        %476 = vmatpush1.bf16.msra.mxu0 0
        %477 = vmatprep.subr.bf16.mxu0 0
        %478 = vmatpush1.bf16.msra.mxu0 0
        %479 = vmatprep.subr.bf16.mxu0 0
        %480 = vmatpush1.bf16.msra.mxu0 0
        %481 = vmatprep.subr.bf16.mxu0 0
        %482 = vmatpush1.bf16.msra.mxu0 0
        %483 = vmatprep.mubr.bf16.mxu0 0
        %484 = vmatmul.mubr.bf16.gmra.mrb[0].mxu0 %v440
        %v485 = vpop.f32.mrb[0].mxu0
        %v486 = vadd.f32 0.0, %v485
        %v487 = vpop.f32.mrb[0].mxu0
        %v488 = vpop.f32.mrb[0].mxu0
        %v489 = vadd.f32 0.0, %v488
        %v490 = vpop.f32.mrb[0].mxu0
        %491 = vmatprep.mubr.bf16.mxu0 0
        %492 = vmatmul.mubr.bf16.gmra.mrb[0].mxu0 %v443
        %v493 = vpop.f32.mrb[0].mxu0
        %v494 = vadd.f32 0.0, %v493
        %v495 = vpop.f32.mrb[0].mxu0
        %v496 = vpop.f32.mrb[0].mxu0
        %v497 = vadd.f32 0.0, %v496
        %v498 = vpop.f32.mrb[0].mxu0
        %499 = vmatprep.mubr.bf16.mxu0 0
        %500 = vmatmul.mubr.bf16.gmra.mrb[0].mxu0 %v446
        %v501 = vpop.f32.mrb[0].mxu0
        %v502 = vadd.f32 0.0, %v501
        %v503 = vpop.f32.mrb[0].mxu0
        %v504 = vpop.f32.mrb[0].mxu0
        %v505 = vadd.f32 0.0, %v504
        %v506 = vpop.f32.mrb[0].mxu0
        %507 = vmatprep.mubr.bf16.mxu0 0
        %508 = vmatmul.mubr.bf16.gmra.mrb[0].mxu0 %v449
        %v509 = vpop.f32.mrb[0].mxu0
        %v510 = vadd.f32 0.0, %v509
        %v511 = vpop.f32.mrb[0].mxu0
        %v512 = vpop.f32.mrb[0].mxu0
        %v513 = vadd.f32 0.0, %v512
        %v514 = vpop.f32.mrb[0].mxu0
        %515 = vdwg.mxu0
        %v516 = vpack.c.bf16 %v489, %v486
        %v517 = vpack.c.bf16 %v497, %v494
        %v518 = vpack.c.bf16 %v505, %v502
        %v519 = vpack.c.bf16 %v513, %v510
        %v520 = vpack.c.bf16 %v367, %v366
        %v521 = vpack.c.bf16 %v369, %v368
        %522 = vxpose.xlu0.c.b16.start [1/8] %v520, 128
        %523 = vxpose.xlu0.c.b16.cont [2/8] %v521, 128
        %524 = vxpose.xlu0.c.b16.cont [3/8] 0, 128
        %525 = vxpose.xlu0.c.b16.cont [4/8] 0, 128
        %526 = vxpose.xlu0.c.b16.cont [5/8] 0, 128
        %527 = vxpose.xlu0.c.b16.cont [6/8] 0, 128
        %528 = vxpose.xlu0.c.b16.cont [7/8] 0, 128
        %529 = vxpose.xlu0.c.b16.end [8/8] 0, 128
        %v530 = vpop.trf.xlu0
        %v531 = vpop.trf.xlu0
        %v532 = vpop.trf.xlu0
        %v533 = vpop.trf.xlu0
        %v534 = vpop.trf.xlu0
        %v535 = vpop.trf.xlu0
        %v536 = vpop.trf.xlu0
        %v537 = vpop.trf.xlu0
        %v542 = vunpack.c.l.b16 %v378
        %v543 = vunpack.c.l.b16 %v379
        %v544 = vunpack.c.l.b16 %v380
        %v545 = vunpack.c.l.b16 %v381
        %v546 = vpack.c.b16 %v543, %v542
        %v547 = vpack.c.b16 %v545, %v544
        %vm548 = vcmask 261120
        %v550 = vsel %vm548, %v530, 0
        %v553 = vsel %vm548, %v531, 0
        %v556 = vsel %vm548, %v532, 0
        %v559 = vsel %vm548, %v533, 0
        %v562 = vsel %vm548, %v534, 0
        %v565 = vsel %vm548, %v535, 0
        %v568 = vsel %vm548, %v536, 0
        %v571 = vsel %vm548, %v537, 0
        %v574 = vsel %vm548, %v546, 0
        %v577 = vsel %vm548, %v547, 0
        %579 = vmatprep.subr.bf16.mxu0 0
        %580 = vmatpush1.bf16.xpose.msra.mxu0 %v574
        %581 = vmatprep.subr.bf16.mxu0 0
        %582 = vmatpush1.bf16.xpose.msra.mxu0 %v577
        %583 = vmatprep.subr.bf16.mxu0 0
        %584 = vmatpush1.bf16.xpose.msra.mxu0 0
        %585 = vmatprep.subr.bf16.mxu0 0
        %586 = vmatpush1.bf16.xpose.msra.mxu0 0
        %587 = vmatprep.subr.bf16.mxu0 0
        %588 = vmatpush1.bf16.xpose.msra.mxu0 0
        %589 = vmatprep.subr.bf16.mxu0 0
        %590 = vmatpush1.bf16.xpose.msra.mxu0 0
        %591 = vmatprep.subr.bf16.mxu0 0
        %592 = vmatpush1.bf16.xpose.msra.mxu0 0
        %593 = vmatprep.subr.bf16.mxu0 0
        %594 = vmatpush1.bf16.xpose.msra.mxu0 0
        %595 = vmatprep.subr.bf16.mxu0 0
        %596 = vmatpush1.bf16.xpose.msra.mxu0 0
        %597 = vmatprep.subr.bf16.mxu0 0
        %598 = vmatpush1.bf16.xpose.msra.mxu0 0
        %599 = vmatprep.subr.bf16.mxu0 0
        %600 = vmatpush1.bf16.xpose.msra.mxu0 0
        %601 = vmatprep.subr.bf16.mxu0 0
        %602 = vmatpush1.bf16.xpose.msra.mxu0 0
        %603 = vmatprep.subr.bf16.mxu0 0
        %604 = vmatpush1.bf16.xpose.msra.mxu0 0
        %605 = vmatprep.subr.bf16.mxu0 0
        %606 = vmatpush1.bf16.xpose.msra.mxu0 0
        %607 = vmatprep.subr.bf16.mxu0 0
        %608 = vmatpush1.bf16.xpose.msra.mxu0 0
        %609 = vmatprep.subr.bf16.mxu0 0
        %610 = vmatpush1.bf16.xpose.msra.mxu0 0
        %611 = vmatprep.mubr.bf16.mxu0 0
        %612 = vmatmul.mubr.bf16.gmra.mrb[0].mxu0 %v550
        %v613 = vpop.f32.mrb[0].mxu0
        %v614 = vadd.f32 0.0, %v613
        %v615 = vpop.f32.mrb[0].mxu0
        %v616 = vpop.f32.mrb[0].mxu0
        %v617 = vadd.f32 0.0, %v616
        %v618 = vpop.f32.mrb[0].mxu0
        %619 = vmatprep.mubr.bf16.mxu0 0
        %620 = vmatmul.mubr.bf16.gmra.mrb[0].mxu0 %v553
        %v621 = vpop.f32.mrb[0].mxu0
        %v622 = vadd.f32 0.0, %v621
        %v623 = vpop.f32.mrb[0].mxu0
        %v624 = vpop.f32.mrb[0].mxu0
        %v625 = vadd.f32 0.0, %v624
        %v626 = vpop.f32.mrb[0].mxu0
        %627 = vmatprep.mubr.bf16.mxu0 0
        %628 = vmatmul.mubr.bf16.gmra.mrb[0].mxu0 %v556
        %v629 = vpop.f32.mrb[0].mxu0
        %v630 = vadd.f32 0.0, %v629
        %v631 = vpop.f32.mrb[0].mxu0
        %v632 = vpop.f32.mrb[0].mxu0
        %v633 = vadd.f32 0.0, %v632
        %v634 = vpop.f32.mrb[0].mxu0
        %635 = vmatprep.mubr.bf16.mxu0 0
        %636 = vmatmul.mubr.bf16.gmra.mrb[0].mxu0 %v559
        %v637 = vpop.f32.mrb[0].mxu0
        %v638 = vadd.f32 0.0, %v637
        %v639 = vpop.f32.mrb[0].mxu0
        %v640 = vpop.f32.mrb[0].mxu0
        %v641 = vadd.f32 0.0, %v640
        %v642 = vpop.f32.mrb[0].mxu0
        %643 = vmatprep.mubr.bf16.mxu0 0
        %644 = vmatmul.mubr.bf16.gmra.mrb[0].mxu0 %v562
        %v645 = vpop.f32.mrb[0].mxu0
        %v646 = vadd.f32 0.0, %v645
        %v647 = vpop.f32.mrb[0].mxu0
        %v648 = vpop.f32.mrb[0].mxu0
        %v649 = vadd.f32 0.0, %v648
        %v650 = vpop.f32.mrb[0].mxu0
        %651 = vmatprep.mubr.bf16.mxu0 0
        %652 = vmatmul.mubr.bf16.gmra.mrb[0].mxu0 %v565
        %v653 = vpop.f32.mrb[0].mxu0
        %v654 = vadd.f32 0.0, %v653
        %v655 = vpop.f32.mrb[0].mxu0
        %v656 = vpop.f32.mrb[0].mxu0
        %v657 = vadd.f32 0.0, %v656
        %v658 = vpop.f32.mrb[0].mxu0
        %659 = vmatprep.mubr.bf16.mxu0 0
        %660 = vmatmul.mubr.bf16.gmra.mrb[0].mxu0 %v568
        %v661 = vpop.f32.mrb[0].mxu0
        %v662 = vadd.f32 0.0, %v661
        %v663 = vpop.f32.mrb[0].mxu0
        %v664 = vpop.f32.mrb[0].mxu0
        %v665 = vadd.f32 0.0, %v664
        %v666 = vpop.f32.mrb[0].mxu0
        %667 = vmatprep.mubr.bf16.mxu0 0
        %668 = vmatmul.mubr.bf16.gmra.mrb[0].mxu0 %v571
        %v669 = vpop.f32.mrb[0].mxu0
        %v670 = vadd.f32 0.0, %v669
        %v671 = vpop.f32.mrb[0].mxu0
        %v672 = vpop.f32.mrb[0].mxu0
        %v673 = vadd.f32 0.0, %v672
        %v674 = vpop.f32.mrb[0].mxu0
        %675 = vdwg.mxu0
        %v676 = vmul.f32 %v614, 0.17677669
        %v677 = vmul.f32 %v617, 0.17677669
        %v678 = vmul.f32 %v622, 0.17677669
        %v679 = vmul.f32 %v625, 0.17677669
        %v680 = vmul.f32 %v630, 0.17677669
        %v681 = vmul.f32 %v633, 0.17677669
        %v682 = vmul.f32 %v638, 0.17677669
        %v683 = vmul.f32 %v641, 0.17677669
        %v684 = vmul.f32 %v646, 0.17677669
        %v685 = vmul.f32 %v649, 0.17677669
        %v686 = vmul.f32 %v654, 0.17677669
        %v687 = vmul.f32 %v657, 0.17677669
        %v688 = vmul.f32 %v662, 0.17677669
        %v689 = vmul.f32 %v665, 0.17677669
        %v690 = vmul.f32 %v670, 0.17677669
        %v691 = vmul.f32 %v673, 0.17677669
        %v692 = vpack.c.bf16 %v677, %v676
        %v693 = vpack.c.bf16 %v679, %v678
        %v694 = vpack.c.bf16 %v681, %v680
        %v695 = vpack.c.bf16 %v683, %v682
        %v696 = vpack.c.bf16 %v685, %v684
        %v697 = vpack.c.bf16 %v687, %v686
        %v698 = vpack.c.bf16 %v689, %v688
        %v699 = vpack.c.bf16 %v691, %v690
        %v701 = vsel %vm548, %v692, 0
        %v704 = vsel %vm548, %v693, 0
        %v707 = vsel %vm548, %v694, 0
        %v710 = vsel %vm548, %v695, 0
        %v713 = vsel %vm548, %v696, 0
        %v716 = vsel %vm548, %v697, 0
        %v719 = vsel %vm548, %v698, 0
        %v722 = vsel %vm548, %v699, 0
        %724 = vmatprep.subr.bf16.mxu0 0
        %725 = vmatpush1.bf16.msra.mxu0 %v516
        %726 = vmatprep.subr.bf16.mxu0 0
        %727 = vmatpush1.bf16.msra.mxu0 %v517
        %728 = vmatprep.subr.bf16.mxu0 0
        %729 = vmatpush1.bf16.msra.mxu0 0
        %730 = vmatprep.subr.bf16.mxu0 0
        %731 = vmatpush1.bf16.msra.mxu0 0
        %732 = vmatprep.subr.bf16.mxu0 0
        %733 = vmatpush1.bf16.msra.mxu0 0
        %734 = vmatprep.subr.bf16.mxu0 0
        %735 = vmatpush1.bf16.msra.mxu0 0
        %736 = vmatprep.subr.bf16.mxu0 0
        %737 = vmatpush1.bf16.msra.mxu0 0
        %738 = vmatprep.subr.bf16.mxu0 0
        %739 = vmatpush1.bf16.msra.mxu0 0
        %740 = vmatprep.subr.bf16.mxu0 0
        %741 = vmatpush1.bf16.msra.mxu0 0
        %742 = vmatprep.subr.bf16.mxu0 0
        %743 = vmatpush1.bf16.msra.mxu0 0
        %744 = vmatprep.subr.bf16.mxu0 0
        %745 = vmatpush1.bf16.msra.mxu0 0
        %746 = vmatprep.subr.bf16.mxu0 0
        %747 = vmatpush1.bf16.msra.mxu0 0
        %748 = vmatprep.subr.bf16.mxu0 0
        %749 = vmatpush1.bf16.msra.mxu0 0
        %750 = vmatprep.subr.bf16.mxu0 0
        %751 = vmatpush1.bf16.msra.mxu0 0
        %752 = vmatprep.subr.bf16.mxu0 0
        %753 = vmatpush1.bf16.msra.mxu0 0
        %754 = vmatprep.subr.bf16.mxu0 0
        %755 = vmatpush1.bf16.msra.mxu0 0
        %756 = vmatprep.mubr.bf16.mxu0 0
        %757 = vmatmul.mubr.bf16.gmra.mrb[0].mxu0 %v701
        %v758 = vpop.f32.mrb[0].mxu0
        %v759 = vadd.f32 0.0, %v758
        %v760 = vpop.f32.mrb[0].mxu0
        %v761 = vpop.f32.mrb[0].mxu0
        %v762 = vadd.f32 0.0, %v761
        %v763 = vpop.f32.mrb[0].mxu0
        %764 = vmatprep.mubr.bf16.mxu0 0
        %765 = vmatmul.mubr.bf16.gmra.mrb[0].mxu0 %v704
        %v766 = vpop.f32.mrb[0].mxu0
        %v767 = vadd.f32 0.0, %v766
        %v768 = vpop.f32.mrb[0].mxu0
        %v769 = vpop.f32.mrb[0].mxu0
        %v770 = vadd.f32 0.0, %v769
        %v771 = vpop.f32.mrb[0].mxu0
        %772 = vmatprep.mubr.bf16.mxu0 0
        %773 = vmatmul.mubr.bf16.gmra.mrb[0].mxu0 %v707
        %v774 = vpop.f32.mrb[0].mxu0
        %v775 = vadd.f32 0.0, %v774
        %v776 = vpop.f32.mrb[0].mxu0
        %v777 = vpop.f32.mrb[0].mxu0
        %v778 = vadd.f32 0.0, %v777
        %v779 = vpop.f32.mrb[0].mxu0
        %780 = vmatprep.mubr.bf16.mxu0 0
        %781 = vmatmul.mubr.bf16.gmra.mrb[0].mxu0 %v710
        %v782 = vpop.f32.mrb[0].mxu0
        %v783 = vadd.f32 0.0, %v782
        %v784 = vpop.f32.mrb[0].mxu0
        %v785 = vpop.f32.mrb[0].mxu0
        %v786 = vadd.f32 0.0, %v785
        %v787 = vpop.f32.mrb[0].mxu0
        %788 = vmatprep.mubr.bf16.mxu0 0
        %789 = vmatmul.mubr.bf16.gmra.mrb[0].mxu0 %v713
        %v790 = vpop.f32.mrb[0].mxu0
        %v791 = vadd.f32 0.0, %v790
        %v792 = vpop.f32.mrb[0].mxu0
        %v793 = vpop.f32.mrb[0].mxu0
        %v794 = vadd.f32 0.0, %v793
        %v795 = vpop.f32.mrb[0].mxu0
        %796 = vmatprep.mubr.bf16.mxu0 0
        %797 = vmatmul.mubr.bf16.gmra.mrb[0].mxu0 %v716
        %v798 = vpop.f32.mrb[0].mxu0
        %v799 = vadd.f32 0.0, %v798
        %v800 = vpop.f32.mrb[0].mxu0
        %v801 = vpop.f32.mrb[0].mxu0
        %v802 = vadd.f32 0.0, %v801
        %v803 = vpop.f32.mrb[0].mxu0
        %804 = vmatprep.mubr.bf16.mxu0 0
        %805 = vmatmul.mubr.bf16.gmra.mrb[0].mxu0 %v719
        %v806 = vpop.f32.mrb[0].mxu0
        %v807 = vadd.f32 0.0, %v806
        %v808 = vpop.f32.mrb[0].mxu0
        %v809 = vpop.f32.mrb[0].mxu0
        %v810 = vadd.f32 0.0, %v809
        %v811 = vpop.f32.mrb[0].mxu0
        %812 = vmatprep.mubr.bf16.mxu0 0
        %813 = vmatmul.mubr.bf16.gmra.mrb[0].mxu0 %v722
        %v814 = vpop.f32.mrb[0].mxu0
        %v815 = vadd.f32 0.0, %v814
        %v816 = vpop.f32.mrb[0].mxu0
        %v817 = vpop.f32.mrb[0].mxu0
        %v818 = vadd.f32 0.0, %v817
        %v819 = vpop.f32.mrb[0].mxu0
        %820 = vdwg.mxu0
        %821 = vmax.xlane.f32.xlu0 %v759
        %v822 = vpop.xlane.xlu0 %821
        %823 = vmax.xlane.f32.xlu0 %v762
        %v824 = vpop.xlane.xlu0 %823
        %825 = vmax.xlane.f32.xlu0 %v767
        %v826 = vpop.xlane.xlu0 %825
        %827 = vmax.xlane.f32.xlu0 %v770
        %v828 = vpop.xlane.xlu0 %827
        %829 = vmax.xlane.f32.xlu0 %v775
        %v830 = vpop.xlane.xlu0 %829
        %831 = vmax.xlane.f32.xlu0 %v778
        %v832 = vpop.xlane.xlu0 %831
        %833 = vmax.xlane.f32.xlu0 %v783
        %v834 = vpop.xlane.xlu0 %833
        %835 = vmax.xlane.f32.xlu0 %v786
        %v836 = vpop.xlane.xlu0 %835
        %837 = vmax.xlane.f32.xlu0 %v791
        %v838 = vpop.xlane.xlu0 %837
        %839 = vmax.xlane.f32.xlu0 %v794
        %v840 = vpop.xlane.xlu0 %839
        %841 = vmax.xlane.f32.xlu0 %v799
        %v842 = vpop.xlane.xlu0 %841
        %843 = vmax.xlane.f32.xlu0 %v802
        %v844 = vpop.xlane.xlu0 %843
        %845 = vmax.xlane.f32.xlu0 %v807
        %v846 = vpop.xlane.xlu0 %845
        %847 = vmax.xlane.f32.xlu0 %v810
        %v848 = vpop.xlane.xlu0 %847
        %849 = vmax.xlane.f32.xlu0 %v815
        %v850 = vpop.xlane.xlu0 %849
        %851 = vmax.xlane.f32.xlu0 %v818
        %v852 = vpop.xlane.xlu0 %851
        %v853 = vsub.f32 %v759, %v822
        %v854 = vsub.f32 %v762, %v824
        %v855 = vsub.f32 %v767, %v826
        %v856 = vsub.f32 %v770, %v828
        %v857 = vsub.f32 %v775, %v830
        %v858 = vsub.f32 %v778, %v832
        %v859 = vsub.f32 %v783, %v834
        %v860 = vsub.f32 %v786, %v836
        %v861 = vsub.f32 %v791, %v838
        %v862 = vsub.f32 %v794, %v840
        %v863 = vsub.f32 %v799, %v842
        %v864 = vsub.f32 %v802, %v844
        %v865 = vsub.f32 %v807, %v846
        %v866 = vsub.f32 %v810, %v848
        %v867 = vsub.f32 %v815, %v850
        %v868 = vsub.f32 %v818, %v852
        %v869 = vmul.f32 %v853, 1.442695
        %v870 = vpow.pop %v869
        %v871 = vmul.f32 %v854, 1.442695
        %v872 = vpow.pop %v871
        %v873 = vmul.f32 %v855, 1.442695
        %v874 = vpow.pop %v873
        %v875 = vmul.f32 %v856, 1.442695
        %v876 = vpow.pop %v875
        %v877 = vmul.f32 %v857, 1.442695
        %v878 = vpow.pop %v877
        %v879 = vmul.f32 %v858, 1.442695
        %v880 = vpow.pop %v879
        %v881 = vmul.f32 %v859, 1.442695
        %v882 = vpow.pop %v881
        %v883 = vmul.f32 %v860, 1.442695
        %v884 = vpow.pop %v883
        %v885 = vmul.f32 %v861, 1.442695
        %v886 = vpow.pop %v885
        %v887 = vmul.f32 %v862, 1.442695
        %v888 = vpow.pop %v887
        %v889 = vmul.f32 %v863, 1.442695
        %v890 = vpow.pop %v889
        %v891 = vmul.f32 %v864, 1.442695
        %v892 = vpow.pop %v891
        %v893 = vmul.f32 %v865, 1.442695
        %v894 = vpow.pop %v893
        %v895 = vmul.f32 %v866, 1.442695
        %v896 = vpow.pop %v895
        %v897 = vmul.f32 %v867, 1.442695
        %v898 = vpow.pop %v897
        %v899 = vmul.f32 %v868, 1.442695
        %v900 = vpow.pop %v899
        %v901 = vpack.c.bf16 %v872, %v870
        %v902 = vpack.c.bf16 %v876, %v874
        %v903 = vpack.c.bf16 %v880, %v878
        %v904 = vpack.c.bf16 %v884, %v882
        %v905 = vpack.c.bf16 %v888, %v886
        %v906 = vpack.c.bf16 %v892, %v890
        %v907 = vpack.c.bf16 %v896, %v894
        %v908 = vpack.c.bf16 %v900, %v898
        %909 = vmatprep.subr.bf16.mxu0 0
        %910 = vmatpush1.bf16.xpose.msra.mxu0 %v901
        %911 = vmatprep.subr.bf16.mxu0 0
        %912 = vmatpush1.bf16.xpose.msra.mxu0 %v902
        %913 = vmatprep.subr.bf16.mxu0 0
        %914 = vmatpush1.bf16.xpose.msra.mxu0 %v903
        %915 = vmatprep.subr.bf16.mxu0 0
        %916 = vmatpush1.bf16.xpose.msra.mxu0 %v904
        %917 = vmatprep.subr.bf16.mxu0 0
        %918 = vmatpush1.bf16.xpose.msra.mxu0 %v905
        %919 = vmatprep.subr.bf16.mxu0 0
        %920 = vmatpush1.bf16.xpose.msra.mxu0 %v906
        %921 = vmatprep.subr.bf16.mxu0 0
        %922 = vmatpush1.bf16.xpose.msra.mxu0 %v907
        %923 = vmatprep.subr.bf16.mxu0 0
        %924 = vmatpush1.bf16.xpose.msra.mxu0 %v908
        %925 = vmatprep.subr.bf16.mxu0 0
        %926 = vmatpush1.bf16.xpose.msra.mxu0 0
        %927 = vmatprep.subr.bf16.mxu0 0
        %928 = vmatpush1.bf16.xpose.msra.mxu0 0
        %929 = vmatprep.subr.bf16.mxu0 0
        %930 = vmatpush1.bf16.xpose.msra.mxu0 0
        %931 = vmatprep.subr.bf16.mxu0 0
        %932 = vmatpush1.bf16.xpose.msra.mxu0 0
        %933 = vmatprep.subr.bf16.mxu0 0
        %934 = vmatpush1.bf16.xpose.msra.mxu0 0
        %935 = vmatprep.subr.bf16.mxu0 0
        %936 = vmatpush1.bf16.xpose.msra.mxu0 0
        %937 = vmatprep.subr.bf16.mxu0 0
        %938 = vmatpush1.bf16.xpose.msra.mxu0 0
        %939 = vmatprep.subr.bf16.mxu0 0
        %940 = vmatpush1.bf16.xpose.msra.mxu0 0
        %941 = vmatprep.mubr.bf16.mxu0 0
        %942 = vmatmul.mubr.bf16.gmra.mrb[0].mxu0 %v518
        %v943 = vpop.f32.mrb[0].mxu0
        %v944 = vadd.f32 0.0, %v943
        %v945 = vpop.f32.mrb[0].mxu0
        %v946 = vpop.f32.mrb[0].mxu0
        %v947 = vadd.f32 0.0, %v946
        %v948 = vpop.f32.mrb[0].mxu0
        %949 = vmatprep.mubr.bf16.mxu0 0
        %950 = vmatmul.mubr.bf16.gmra.mrb[0].mxu0 %v519
        %v951 = vpop.f32.mrb[0].mxu0
        %v952 = vadd.f32 0.0, %v951
        %v953 = vpop.f32.mrb[0].mxu0
        %v954 = vpop.f32.mrb[0].mxu0
        %v955 = vadd.f32 0.0, %v954
        %v956 = vpop.f32.mrb[0].mxu0
        %957 = vmatprep.mubr.bf16.mxu0 0
        %958 = vmatmul.mubr.bf16.gmra.mrb[0].mxu0 1065369472
        %v959 = vpop.f32.mrb[0].mxu0
        %v960 = vadd.f32 0.0, %v959
        %v961 = vpop.f32.mrb[0].mxu0
        %v962 = vpop.f32.mrb[0].mxu0
        %v963 = vpop.f32.mrb[0].mxu0
        %964 = vdwg.mxu0
        %v965 = vrcp.pop %v960
        %v966 = vlaneseq
        %v967 = vshrl.u32 %v966, 7
        %v968 = vsub.s32 0, %v967
        %v969 = vrot.slane %v965, %v968
        %v970 = vmul.f32 %v944, %v969
        %v971 = vmul.f32 %v947, %v969
        %v972 = vmul.f32 %v952, %v969
        %v973 = vmul.f32 %v955, %v969
        %v974 = vsub.f32 %v366, %v970
        %v975 = vsub.f32 %v367, %v971
        %v976 = vsub.f32 %v368, %v972
        %v977 = vsub.f32 %v369, %v973
        %v978 = vpack.c.bf16 %v975, %v974
        %v979 = vpack.c.bf16 %v977, %v976
        %v984 = vunpack.c.l.b16 %v390
        %v985 = vunpack.c.l.b16 %v391
        %v986 = vunpack.c.l.b16 %v392
        %v987 = vunpack.c.l.b16 %v393
        %v988 = vpack.c.b16 %v985, %v984
        %v989 = vpack.c.b16 %v987, %v986
        %v991 = vsel %vm548, %v988, 0
        %v994 = vsel %vm548, %v989, 0
        %996 = vmatprep.subr.bf16.mxu0 0
        %997 = vmatpush1.bf16.msra.mxu0 %v978
        %998 = vmatprep.subr.bf16.mxu0 0
        %999 = vmatpush1.bf16.msra.mxu0 %v979
        %1000 = vmatprep.subr.bf16.mxu0 0
        %1001 = vmatpush1.bf16.msra.mxu0 0
        %1002 = vmatprep.subr.bf16.mxu0 0
        %1003 = vmatpush1.bf16.msra.mxu0 0
        %1004 = vmatprep.subr.bf16.mxu0 0
        %1005 = vmatpush1.bf16.msra.mxu0 0
        %1006 = vmatprep.subr.bf16.mxu0 0
        %1007 = vmatpush1.bf16.msra.mxu0 0
        %1008 = vmatprep.subr.bf16.mxu0 0
        %1009 = vmatpush1.bf16.msra.mxu0 0
        %1010 = vmatprep.subr.bf16.mxu0 0
        %1011 = vmatpush1.bf16.msra.mxu0 0
        %1012 = vmatprep.subr.bf16.mxu0 0
        %1013 = vmatpush1.bf16.msra.mxu0 0
        %1014 = vmatprep.subr.bf16.mxu0 0
        %1015 = vmatpush1.bf16.msra.mxu0 0
        %1016 = vmatprep.subr.bf16.mxu0 0
        %1017 = vmatpush1.bf16.msra.mxu0 0
        %1018 = vmatprep.subr.bf16.mxu0 0
        %1019 = vmatpush1.bf16.msra.mxu0 0
        %1020 = vmatprep.subr.bf16.mxu0 0
        %1021 = vmatpush1.bf16.msra.mxu0 0
        %1022 = vmatprep.subr.bf16.mxu0 0
        %1023 = vmatpush1.bf16.msra.mxu0 0
        %1024 = vmatprep.subr.bf16.mxu0 0
        %1025 = vmatpush1.bf16.msra.mxu0 0
        %1026 = vmatprep.subr.bf16.mxu0 0
        %1027 = vmatpush1.bf16.msra.mxu0 0
        %1028 = vmatprep.mubr.bf16.mxu0 0
        %1029 = vmatmul.mubr.bf16.gmra.mrb[0].mxu0 %v991
        %v1030 = vpop.f32.mrb[0].mxu0
        %v1031 = vadd.f32 0.0, %v1030
        %v1032 = vpop.f32.mrb[0].mxu0
        %v1033 = vpop.f32.mrb[0].mxu0
        %v1034 = vadd.f32 0.0, %v1033
        %v1035 = vpop.f32.mrb[0].mxu0
        %1036 = vmatprep.mubr.bf16.mxu0 0
        %1037 = vmatmul.mubr.bf16.gmra.mrb[0].mxu0 %v994
        %v1038 = vpop.f32.mrb[0].mxu0
        %v1039 = vadd.f32 0.0, %v1038
        %v1040 = vpop.f32.mrb[0].mxu0
        %v1041 = vpop.f32.mrb[0].mxu0
        %v1042 = vadd.f32 0.0, %v1041
        %v1043 = vpop.f32.mrb[0].mxu0
        %1044 = vdwg.mxu0
        %v1045 = vpack.c.bf16 %v1034, %v1031
        %v1046 = vpack.c.bf16 %v1042, %v1039
        %v1049 = vunpack.c.l.b16 %v1045
        %v1050 = vunpack.c.h.b16 %v1045
        %v1051 = vunpack.c.l.b16 %v1046
        %v1052 = vunpack.c.h.b16 %v1046
        %v1053 = vpack.c.b16 %v1049, %v1049
        %v1054 = vpack.c.b16 %v1050, %v1050
        %v1055 = vpack.c.b16 %v1051, %v1051
        %v1056 = vpack.c.b16 %v1052, %v1052
        %1061 = vst [vmem:[%s356] sm:$0xf] %v1053
        %1062 = vst [vmem:[%s356 + $0x4] sm:$0xf] %v1054
        %1063 = vst [vmem:[%s356 + $0x8] sm:$0xf] %v1055
        %1064 = vst [vmem:[%s356 + $0xc] sm:$0xf] %v1056
        %1065 = vmatprep.subr.mxu0 0.0
        %1066 = vmatpush1.xpose.msra.mxu0 %v1031
        %1067 = vmatprep.subr.mxu0 0.0
        %1068 = vmatpush1.xpose.msra.mxu0 %v1034
        %1069 = vmatprep.subr.mxu0 0.0
        %1070 = vmatpush1.xpose.msra.mxu0 %v1039
        %1071 = vmatprep.subr.mxu0 0.0
        %1072 = vmatpush1.xpose.msra.mxu0 %v1042
        %1073 = vmatprep.subr.mxu0 0.0
        %1074 = vmatpush1.xpose.msra.mxu0 0.0
        %1075 = vmatprep.subr.mxu0 0.0
        %1076 = vmatpush1.xpose.msra.mxu0 0.0
        %1077 = vmatprep.subr.mxu0 0.0
        %1078 = vmatpush1.xpose.msra.mxu0 0.0
        %1079 = vmatprep.subr.mxu0 0.0
        %1080 = vmatpush1.xpose.msra.mxu0 0.0
        %1081 = vmatprep.subr.mxu0 0.0
        %1082 = vmatpush1.xpose.msra.mxu0 0.0
        %1083 = vmatprep.subr.mxu0 0.0
        %1084 = vmatpush1.xpose.msra.mxu0 0.0
        %1085 = vmatprep.subr.mxu0 0.0
        %1086 = vmatpush1.xpose.msra.mxu0 0.0
        %1087 = vmatprep.subr.mxu0 0.0
        %1088 = vmatpush1.xpose.msra.mxu0 0.0
        %1089 = vmatprep.subr.mxu0 0.0
        %1090 = vmatpush1.xpose.msra.mxu0 0.0
        %1091 = vmatprep.subr.mxu0 0.0
        %1092 = vmatpush1.xpose.msra.mxu0 0.0
        %1093 = vmatprep.subr.mxu0 0.0
        %1094 = vmatpush1.xpose.msra.mxu0 0.0
        %1095 = vmatprep.subr.mxu0 0.0
        %1096 = vmatpush1.xpose.msra.mxu0 0.0
        %1097 = vmatprep.subr.mxu0 0.0
        %1098 = vmatpush1.xpose.msra.mxu0 0.0
        %1099 = vmatprep.subr.mxu0 0.0
        %1100 = vmatpush1.xpose.msra.mxu0 0.0
        %1101 = vmatprep.subr.mxu0 0.0
        %1102 = vmatpush1.xpose.msra.mxu0 0.0
        %1103 = vmatprep.subr.mxu0 0.0
        %1104 = vmatpush1.xpose.msra.mxu0 0.0
        %1105 = vmatprep.subr.mxu0 0.0
        %1106 = vmatpush1.xpose.msra.mxu0 0.0
        %1107 = vmatprep.subr.mxu0 0.0
        %1108 = vmatpush1.xpose.msra.mxu0 0.0
        %1109 = vmatprep.subr.mxu0 0.0
        %1110 = vmatpush1.xpose.msra.mxu0 0.0
        %1111 = vmatprep.subr.mxu0 0.0
        %1112 = vmatpush1.xpose.msra.mxu0 0.0
        %1113 = vmatprep.subr.mxu0 0.0
        %1114 = vmatpush1.xpose.msra.mxu0 0.0
        %1115 = vmatprep.subr.mxu0 0.0
        %1116 = vmatpush1.xpose.msra.mxu0 0.0
        %1117 = vmatprep.subr.mxu0 0.0
        %1118 = vmatpush1.xpose.msra.mxu0 0.0
        %1119 = vmatprep.subr.mxu0 0.0
        %1120 = vmatpush1.xpose.msra.mxu0 0.0
        %1121 = vmatprep.subr.mxu0 0.0
        %1122 = vmatpush1.xpose.msra.mxu0 0.0
        %1123 = vmatprep.subr.mxu0 0.0
        %1124 = vmatpush1.xpose.msra.mxu0 0.0
        %1125 = vmatprep.subr.mxu0 0.0
        %1126 = vmatpush1.xpose.msra.mxu0 0.0
        %1127 = vmatprep.subr.mxu0 0.0
        %1128 = vmatpush1.xpose.msra.mxu0 0.0
        %1129 = vmatprep.mubr.f32.mxu0 0.0
        %1130 = vmatmul.mubr.f32.gmra.mrb[0].mxu0 1.0
        %v1131 = vpop.f32.mrb[0].mxu0
        %v1132 = vadd.f32 0.0, %v1131
        %v1133 = vpop.f32.mrb[0].mxu0
        %1134 = vdwg.mxu0
        %v1135 = vmul.f32 %v1031, %v1031
        %v1136 = vmul.f32 %v1034, %v1034
        %v1137 = vmul.f32 %v1039, %v1039
        %v1138 = vmul.f32 %v1042, %v1042
        %1139 = vmatprep.subr.mxu0 0.0
        %1140 = vmatpush1.xpose.msra.mxu0 %v1135
        %1141 = vmatprep.subr.mxu0 0.0
        %1142 = vmatpush1.xpose.msra.mxu0 %v1136
        %1143 = vmatprep.subr.mxu0 0.0
        %1144 = vmatpush1.xpose.msra.mxu0 %v1137
        %1145 = vmatprep.subr.mxu0 0.0
        %1146 = vmatpush1.xpose.msra.mxu0 %v1138
        %1147 = vmatprep.subr.mxu0 0.0
        %1148 = vmatpush1.xpose.msra.mxu0 0.0
        %1149 = vmatprep.subr.mxu0 0.0
        %1150 = vmatpush1.xpose.msra.mxu0 0.0
        %1151 = vmatprep.subr.mxu0 0.0
        %1152 = vmatpush1.xpose.msra.mxu0 0.0
        %1153 = vmatprep.subr.mxu0 0.0
        %1154 = vmatpush1.xpose.msra.mxu0 0.0
        %1155 = vmatprep.subr.mxu0 0.0
        %1156 = vmatpush1.xpose.msra.mxu0 0.0
        %1157 = vmatprep.subr.mxu0 0.0
        %1158 = vmatpush1.xpose.msra.mxu0 0.0
        %1159 = vmatprep.subr.mxu0 0.0
        %1160 = vmatpush1.xpose.msra.mxu0 0.0
        %1161 = vmatprep.subr.mxu0 0.0
        %1162 = vmatpush1.xpose.msra.mxu0 0.0
        %1163 = vmatprep.subr.mxu0 0.0
        %1164 = vmatpush1.xpose.msra.mxu0 0.0
        %1165 = vmatprep.subr.mxu0 0.0
        %1166 = vmatpush1.xpose.msra.mxu0 0.0
        %1167 = vmatprep.subr.mxu0 0.0
        %1168 = vmatpush1.xpose.msra.mxu0 0.0
        %1169 = vmatprep.subr.mxu0 0.0
        %1170 = vmatpush1.xpose.msra.mxu0 0.0
        %1171 = vmatprep.subr.mxu0 0.0
        %1172 = vmatpush1.xpose.msra.mxu0 0.0
        %1173 = vmatprep.subr.mxu0 0.0
        %1174 = vmatpush1.xpose.msra.mxu0 0.0
        %1175 = vmatprep.subr.mxu0 0.0
        %1176 = vmatpush1.xpose.msra.mxu0 0.0
        %1177 = vmatprep.subr.mxu0 0.0
        %1178 = vmatpush1.xpose.msra.mxu0 0.0
        %1179 = vmatprep.subr.mxu0 0.0
        %1180 = vmatpush1.xpose.msra.mxu0 0.0
        %1181 = vmatprep.subr.mxu0 0.0
        %1182 = vmatpush1.xpose.msra.mxu0 0.0
        %1183 = vmatprep.subr.mxu0 0.0
        %1184 = vmatpush1.xpose.msra.mxu0 0.0
        %1185 = vmatprep.subr.mxu0 0.0
        %1186 = vmatpush1.xpose.msra.mxu0 0.0
        %1187 = vmatprep.subr.mxu0 0.0
        %1188 = vmatpush1.xpose.msra.mxu0 0.0
        %1189 = vmatprep.subr.mxu0 0.0
        %1190 = vmatpush1.xpose.msra.mxu0 0.0
        %1191 = vmatprep.subr.mxu0 0.0
        %1192 = vmatpush1.xpose.msra.mxu0 0.0
        %1193 = vmatprep.subr.mxu0 0.0
        %1194 = vmatpush1.xpose.msra.mxu0 0.0
        %1195 = vmatprep.subr.mxu0 0.0
        %1196 = vmatpush1.xpose.msra.mxu0 0.0
        %1197 = vmatprep.subr.mxu0 0.0
        %1198 = vmatpush1.xpose.msra.mxu0 0.0
        %1199 = vmatprep.subr.mxu0 0.0
        %1200 = vmatpush1.xpose.msra.mxu0 0.0
        %1201 = vmatprep.subr.mxu0 0.0
        %1202 = vmatpush1.xpose.msra.mxu0 0.0
        %1203 = vmatprep.mubr.f32.mxu0 0.0
        %1204 = vmatmul.mubr.f32.gmra.mrb[0].mxu0 1.0
        %v1205 = vpop.f32.mrb[0].mxu0
        %v1206 = vadd.f32 0.0, %v1205
        %v1207 = vpop.f32.mrb[0].mxu0
        %1208 = vdwg.mxu0
        %v1210 = vrot.slane %v1206, 7
        %vm1212 = vcmask 1040384
        %v1213 = vsel %vm1212, %v1132, %v1210
        %vm1214 = vcmask 254976
        %1215 = vst.msk [vmem:[%s363] sm:$0x3] %vm1214, %v1213
        %s1216 = sand.u32 %s154, 1
        %s1217 = scalar_lea.sflag [#allocation4], %s1216
        %s1218 = sand.u32 %s154, 1
        %s1219 = smul.addr %s1218, 16
        %s1220 = scalar_lea.vmem [#allocation11], %s1219
        %s1221 = sand.u32 %s180, 1
        %s1222 = scalar_lea.sflag [#allocation13], %s1221
        %s1223 = sand.u32 %s180, 1
        %s1224 = smul.addr %s1223, 2
        %s1225 = scalar_lea.vmem [#allocation12], %s1224
        // Predicated region
        $region61: #{tpu_custom_call.1} parent=39 // pred_check
          %p1226 = pneg %p164
        $region62: #{tpu_custom_call.1} parent=39 // pred_check_branch
          %1228 = sbr.rel (%p1226) target = $region64
        $region63: #{tpu_custom_call.1} parent=39 // pred_region
          %s1230 = ssub.s32 256, 256
          %1231 = vsyncadd %s1217, %s1230
          %s1232 = smul.addr %s31, 4
          %s1233 = smul.addr %s1232, 64
          %s1234 = scalar_lea.hbm %s5, %s1233
          %s1235 = sshll.u32 %s1220, 4
          %s1236 = int_to_ptr.vmem [resolvable:$true] %s1235
          %1241 = dma.vmem_to_hbm [thread:$0]  %s1236, 256, %s1234, %s1217, 64, 64, 4
        $region64: #{tpu_custom_call.1} parent=39 // pred_fallthru
          _
        // Predicated region
        $region65: #{tpu_custom_call.1} parent=39 // pred_check
          %p1242 = pneg %p190
        $region66: #{tpu_custom_call.1} parent=39 // pred_check_branch
          %1244 = sbr.rel (%p1242) target = $region68
        $region67: #{tpu_custom_call.1} parent=39 // pred_region
          %s1246 = ssub.s32 32, 32
          %1247 = vsyncadd %s1222, %s1246
          %s1248 = smul.addr %s31, 32
          %s1249 = scalar_lea.hbm %s6, %s1248
          %s1251 = sshll.u32 %s1225, 4
          %s1252 = int_to_ptr.vmem [resolvable:$true] %s1251
          %1254 = dma.vmem_to_hbm [thread:$0]  %s1252, 32, %s1249, %s1222
        $region68: #{tpu_custom_call.1} parent=39 // pred_fallthru
          _
      $region40: #{tpu_custom_call.1} parent=5 // pred_fallthru
        _
      %p1255 = scmp.le.s32.totalorder 2, %s26
      // Predicated region
      $region69: #{tpu_custom_call.1} parent=5 // pred_check
        %p1256 = pneg %p1255
      $region70: #{tpu_custom_call.1} parent=5 // pred_check_branch
        %1258 = sbr.rel (%p1256) target = $region72
      $region71: #{tpu_custom_call.1} parent=5 // pred_region
        %s1259 = ssub.s32 %s26, 2
        // Predicated region
        $region73: #{tpu_custom_call.1} parent=71 // pred_check
          %p1260 = pneg %p170
        $region74: #{tpu_custom_call.1} parent=71 // pred_check_branch
          %1262 = sbr.rel (%p1260) target = $region76
        $region75: #{tpu_custom_call.1} parent=71 // pred_region
          %s1263 = sand.u32 %s155, 1
          %s1264 = scalar_lea.sflag [#allocation4], %s1263
          %s1265 = sand.u32 %s155, 1
          %s1266 = smul.addr %s1265, 16
          %s1267 = scalar_lea.vmem [#allocation11], %s1266
          %1268 = dma.done %s1264, 256
        $region76: #{tpu_custom_call.1} parent=71 // pred_fallthru
          _
        // Predicated region
        $region77: #{tpu_custom_call.1} parent=71 // pred_check
          %p1269 = pneg %p196
        $region78: #{tpu_custom_call.1} parent=71 // pred_check_branch
          %1271 = sbr.rel (%p1269) target = $region80
        $region79: #{tpu_custom_call.1} parent=71 // pred_region
          %s1272 = sand.u32 %s181, 1
          %s1273 = scalar_lea.sflag [#allocation13], %s1272
          %s1274 = sand.u32 %s181, 1
          %s1275 = smul.addr %s1274, 2
          %s1276 = scalar_lea.vmem [#allocation12], %s1275
          %1277 = dma.done %s1273, 32
        $region80: #{tpu_custom_call.1} parent=71 // pred_fallthru
          _
      $region72: #{tpu_custom_call.1} parent=5 // pred_fallthru
        _
    $region6: #{tpu_custom_call.1} parent=1 // loop_footer
      %s30 = sadd.s32 1, %s26
    $region7: #{tpu_custom_call.1} parent=1 // loop_footer_branch
      %25 = sbr.rel target = $region3
    $region8: #{tpu_custom_call.1} parent=1 // loop_exit
      _
    %1278 = vsyncpa [#allocation3], 1
    %s1279 = scalar_lea.sflag [#allocation3], 1
    %1280 = vsyncpa %s1279, 1
    %1281 = vsyncpa [#allocation6], 1
    %s1282 = scalar_lea.sflag [#allocation6], 1
    %1283 = vsyncpa %s1282, 1
    %1284 = vsyncpa [#allocation9], 1
    %1285 = vsyncpa [#allocation4], 1
    %s1286 = scalar_lea.sflag [#allocation4], 1
    %1287 = vsyncpa %s1286, 1
    %1288 = vsyncpa [#allocation13], 1
    %s1289 = scalar_lea.sflag [#allocation13], 1
    %1290 = vsyncpa %s1289, 1

</llo_original>
